<compile_context>
chip_gen: v6e
topology: v6e:2x2x1
jax: 0.10.0
libtpu: 0.0.40
codegen_flags: <defaults>
</compile_context>

<pallas_src>
import jax
import jax.numpy as jnp
import numpy as np
from jax import lax
from jax.experimental import pallas as pl
from jax.experimental.pallas import tpu as pltpu


def _round_up(a, m):
    return (a + m - 1) // m * m


def _fold_kernel(g_ref, const_ref, x_ref, o_ref):
    """One batch tile: x_ref (TB, N*N) lane-dense -> o_ref (1, TB) lane-dense."""
    x = x_ref[...]                       # (TB, NN) f32, VMEM
    g = g_ref[...]                       # (1, NN)  f32, grid-invariant in VMEM
    out = jnp.sum(x * g, axis=-1)        # VPU FMAs + one cross-lane reduce -> (TB,)
    o_ref[...] = (out + const_ref[0])[None, :]


def _fold_parameters(wconv, bconv, wlin, blin, coef, N):
    """Collapse conv -> linear -> coef-sum into (G (N, N), const). Parameter-only
    math, done ONCE in the wrapper (hoisted out of the kernel body)."""
    C, _, k, _ = wconv.shape
    H = W = N - k + 1
    rows, cols = coef.shape
    rc = rows * cols

    coef_flat = coef.reshape(rc).astype(jnp.float32)
    wlin_r = wlin.reshape(rc, C, H, W).astype(jnp.float32)   # torch .view(-1) order
    wc = wconv.astype(jnp.float32)

    # w_eff[c,h,w] = sum_r coef[r] * W_lin[r,c,h,w]
    w_eff = jnp.einsum('r,rchw->chw', coef_flat, wlin_r)
    const = coef_flat @ blin.astype(jnp.float32) \
        + jnp.einsum('chw,c->', w_eff, bconv.astype(jnp.float32))

    # G[i,j] = sum_{c,di,dj} W_conv[c,0,di,dj] * w_eff[c, i-di, j-dj]   (valid idx)
    G = jnp.zeros((N, N), jnp.float32)
    for di in range(k):
        for dj in range(k):
            g_dd = jnp.einsum('c,chw->hw', wc[:, 0, di, dj], w_eff)
            G = G.at[di:di + H, dj:dj + W].add(g_dd)
    return G, const


def conv_forward(x, wconv, bconv, wlin, blin, coef):
    """Pallas implementation of Conv.forward.

    x:     (B, N, N) or (N, N)
    wconv: (C, 1, k, k)   conv weight        bconv: (C,)   conv bias
    wlin:  (rows*cols, C*H*W) linear weight  blin:  (rows*cols,) linear bias
    coef:  (rows, cols)
    returns (B,) float32
    """
    if x.ndim == 2:
        x = x[None]
    assert x.ndim == 3
    B, N, _ = x.shape
    NN = N * N

    # Parameter-only fold (hoisted out of the kernel).
    G, const = _fold_parameters(wconv, bconv, wlin, blin, coef, N)
    g2d = G.reshape(1, NN)
    const1 = jnp.reshape(const, (1,)).astype(jnp.float32)

    # Batch tile selection (per perf review):
    #  - B <= 128: whole padded batch in a single grid step (block == full dims,
    #    so any multiple-of-8 TB is layout-legal).
    #  - B  > 128: TB a multiple of 128 (lane-dense blocks), 128..1024, and at
    #    least 2 grid steps so the "parallel" batch axis shards across v7x's
    #    two TensorCores.  1024 * NN * 4 bytes = 1 MiB per buffer at N=16, well
    #    under v7x's 32 MiB scoped VMEM even double-buffered.
    if B <= 128:
        TB = _round_up(max(B, 8), 8)
        B_pad = TB
    else:
        TB = min(1024, _round_up(pl.cdiv(B, 2), 128))
        B_pad = _round_up(B, TB)
    grid = B_pad // TB

    # Lane-dense x: (B, N, N) -> (B, N*N) (contiguous reshape, layout plumbing only).
    x2d = x.reshape(B, NN).astype(jnp.float32)
    if B_pad != B:
        x2d = jnp.pad(x2d, ((0, B_pad - B), (0, 0)))

    # Explicit VMEM budget from the actual footprint (double-buffered x tile +
    # grid-invariant G + double-buffered output), ~2x headroom, 4 MiB floor.
    need = 2 * (TB * NN * 4) + (NN * 4) + 2 * (TB * 4)
    vmem_limit = int(min(32 << 20, max(4 << 20, 2 * need)))

    out = pl.pallas_call(
        _fold_kernel,
        out_shape=jax.ShapeDtypeStruct((1, B_pad), jnp.float32),
        grid=(grid,),
        in_specs=[
            pl.BlockSpec((1, NN), lambda b: (0, 0)),                # G, grid-invariant
            pl.BlockSpec(memory_space=pltpu.MemorySpace.SMEM),      # const scalar
            pl.BlockSpec((TB, NN), lambda b: (b, 0)),               # x tile, lane-dense
        ],
        out_specs=pl.BlockSpec((1, TB), lambda b: (0, b)),          # batch along lanes
        compiler_params=pltpu.CompilerParams(
            dimension_semantics=("parallel",),
            vmem_limit_bytes=vmem_limit,
        ),
    )(g2d, const1, x2d)

    # Padded batch rows evaluate to `const`, not 0 -- slice them off.
    return out[0, :B]


def conv_forward_reference(x, wconv, bconv, wlin, blin, coef):
    """Pure-JAX reference matching the PyTorch forward."""
    if x.ndim == 2:
        x = x[None]
    B = x.shape[0]
    y = lax.conv_general_dilated(
        x[:, None].astype(jnp.float32), wconv.astype(jnp.float32),
        window_strides=(1, 1), padding="VALID",
        dimension_numbers=("NCHW", "OIHW", "NCHW"))
    y = y + bconv[None, :, None, None]
    z = y.reshape(B, -1) @ wlin.T + blin[None]          # (B, rows*cols)
    return (z * coef.reshape(-1)[None]).sum(axis=-1)    # (B,)


if __name__ == "__main__":
    key = jax.random.PRNGKey(0)
    k_x, k_x2, k_wc, k_bc, k_wl, k_bl, k_cf = jax.random.split(key, 7)

    B, N = 12, 16            # 12 graphs of size 16x16 (single-step path + padding)
    C, K = 4, 6              # conv channels / kernel size
    ROWS, COLS = 3, 4
    H = W = N - K + 1
    FEAT = C * H * W

    x = jax.random.normal(k_x, (B, N, N), dtype=jnp.float32)

    # Deterministic parameter init mirroring the module (kaiming_normal_ on dim>1 params).
    wconv = jax.random.normal(k_wc, (C, 1, K, K), jnp.float32) * jnp.sqrt(2.0 / (K * K))
    bconv = (jax.random.uniform(k_bc, (C,), jnp.float32) - 0.5) / jnp.sqrt(float(K * K))
    wlin = jax.random.normal(k_wl, (ROWS * COLS, FEAT), jnp.float32) * jnp.sqrt(2.0 / FEAT)
    blin = (jax.random.uniform(k_bl, (ROWS * COLS,), jnp.float32) - 0.5) / jnp.sqrt(float(FEAT))
    coef = jax.random.normal(k_cf, (ROWS, COLS), jnp.float32) * jnp.sqrt(2.0 / COLS)

    # Small batch: single-step grid with padding.
    out = jax.block_until_ready(conv_forward(x, wconv, bconv, wlin, blin, coef))
    ref = jax.block_until_ready(conv_forward_reference(x, wconv, bconv, wlin, blin, coef))
    np.testing.assert_allclose(np.asarray(out), np.asarray(ref), rtol=2e-3, atol=2e-3)

    # Larger batch: exercises the multi-step, lane-dense, 2x-parallel grid path.
    B2 = 300
    x2 = jax.random.normal(k_x2, (B2, N, N), dtype=jnp.float32)
    out2 = jax.block_until_ready(conv_forward(x2, wconv, bconv, wlin, blin, coef))
    ref2 = jax.block_until_ready(conv_forward_reference(x2, wconv, bconv, wlin, blin, coef))
    np.testing.assert_allclose(np.asarray(out2), np.asarray(ref2), rtol=2e-3, atol=2e-3)

    print("KERNEL_OK")
</pallas_src>

<mosaic_0001>
module attributes {stable_mosaic.version = 11 : i64} {
  func.func @_fold_kernel(%arg0: i32, %arg1: memref<1x256xf32, #tpu.memory_space<vmem>>, %arg2: memref<1xf32, #tpu.memory_space<smem>>, %arg3: memref<16x256xf32, #tpu.memory_space<vmem>>, %arg4: memref<1x16xf32, #tpu.memory_space<vmem>>) attributes {dimension_semantics = [#tpu.dimension_semantics<parallel>], iteration_bounds = array<i64: 1>, scalar_prefetch = 0 : i64, scratch_operands = 0 : i64, tpu.core_type = #tpu.core_type<tc>, window_params = [{pipeline_mode = #tpu.pipeline_mode<synchronous>, transform_indices = @transform_0, window_bounds = array<i64: 1, 256>}, {transform_indices = @transform_1, window_bounds = array<i64: 1>}, {transform_indices = @transform_2, window_bounds = array<i64: 16, 256>}, {transform_indices = @transform_3, window_bounds = array<i64: 1, 16>}]} {
    %c0 = arith.constant 0 : index
    %c0_0 = arith.constant 0 : index
    %0 = vector.load %arg3[%c0, %c0_0] : memref<16x256xf32, #tpu.memory_space<vmem>>, vector<16x256xf32>
    %c0_1 = arith.constant 0 : index
    %c0_2 = arith.constant 0 : index
    %1 = vector.load %arg1[%c0_1, %c0_2] : memref<1x256xf32, #tpu.memory_space<vmem>>, vector<1x256xf32>
    %2 = vector.broadcast %1 : vector<1x256xf32> to vector<16x256xf32>
    %3 = arith.mulf %0, %2 : vector<16x256xf32>
    %cst = arith.constant dense<0.000000e+00> : vector<16xf32>
    %4 = vector.multi_reduction <add>, %3, %cst [1] : vector<16x256xf32> to vector<16xf32>
    %c0_3 = arith.constant 0 : index
    %5 = memref.load %arg2[%c0_3] : memref<1xf32, #tpu.memory_space<smem>>
    %6 = vector.broadcast %5 : f32 to vector<16xf32>
    %7 = arith.addf %4, %6 : vector<16xf32>
    %8 = vector.shape_cast %7 : vector<16xf32> to vector<1x16xf32>
    %c0_4 = arith.constant 0 : index
    %c0_5 = arith.constant 0 : index
    %9 = vector.load %arg4[%c0_4, %c0_5] : memref<1x16xf32, #tpu.memory_space<vmem>>, vector<1x16xf32>
    tpu.vector_store %arg4[%c0_4, %c0_5], %8 {strides = array<i32>} : memref<1x16xf32, #tpu.memory_space<vmem>>, vector<1x16xf32>,
    return
  }
  func.func @transform_0(%arg0: i32) -> (i32, i32) {
    %c0_i32 = arith.constant 0 : i32
    %c0_i32_0 = arith.constant 0 : i32
    %c0_i32_1 = arith.constant 0 : i32
    return %c0_i32, %c0_i32_0 : i32, i32
  }
  func.func @transform_1(%arg0: i32) -> i32 {
    %c0_i32 = arith.constant 0 : i32
    %c0_i32_0 = arith.constant 0 : i32
    return %c0_i32 : i32
  }
  func.func @transform_2(%arg0: i32) -> (i32, i32) {
    %c0_i32 = arith.constant 0 : i32
    %c0_i32_0 = arith.constant 0 : i32
    return %arg0, %c0_i32 : i32, i32
  }
  func.func @transform_3(%arg0: i32) -> (i32, i32) {
    %c0_i32 = arith.constant 0 : i32
    %c0_i32_0 = arith.constant 0 : i32
    return %c0_i32, %arg0 : i32, i32
  }
}

</mosaic_0001>

<llo_original>
// kernel: tpu_custom_call.1
$region0: #{tpu_custom_call.1}
  #allocation0 [shape = 'u32[]', space=smem, size = 0x4, offset = 0x4, fixed_abs, tag = 'smem constant byte address 0x4 - core index']
  #allocation1 [shape = 'u32[144,128]{1,0:T(1,128)}', space=vmem, size = 0x12000, scoped, tag = 'internal scratch']
  #allocation2 [shape = 'f32[1]{0:T(128)S(6)}', space=smem, size = 0x200, scoped, tag = 'scoped memory for tpu_custom_call.1']
  %s0 = inlined_call_operand.vmem [shape: f32[1,256], index: 0, kind: input, shape index: {}]
  %s1 = inlined_call_operand.<no memory space> [shape: f32[1], index: 1, kind: input, shape index: {}]
  %s2 = inlined_call_operand.hbm [shape: f32[16,256], index: 2, kind: input, shape index: {}]
  %s3 = inlined_call_operand.hbm [shape: f32[1,16], index: 3, kind: output, shape index: {}]
  %s4 = sld [smem:[#allocation0]]
  $region26: #{tpu_custom_call.1} parent=0
    _
  %s6 = ssub.s32 1, %s4
  %s7 = scalar_select 0, %s6, %s4
  %8 = sst [smem:[#allocation2]] %s1
  $region1: #{tpu_custom_call.1} parent=0
    #allocation3 [shape = 'u8[16384]{0}', space=vmem, size = 0x4000, scoped, tag = 'input window, operand 2, single buffered']
    #allocation4 [shape = 's32[1]{0}', space=sflag, size = 0x4, scoped, tag = 'scoped memory for tpu_custom_call.1']
    #allocation5 [shape = 's32[1]{0}', space=sflag, size = 0x4, scoped, tag = 'scoped memory for tpu_custom_call.1']
    #allocation6 [shape = 'u8[512]{0}', space=vmem, size = 0x400, scoped, tag = 'output window, operand 0, single buffered']
    %9 = vsyncpa [#allocation4], 0
    %10 = vsyncpa [#allocation5], 0
    // Predicated region
    $region2: #{tpu_custom_call.1} parent=1 // pred_check
      _
    $region3: #{tpu_custom_call.1} parent=1 // pred_check_branch
      %12 = sbr.rel (0) target = $region5
    $region4: #{tpu_custom_call.1} parent=1 // pred_region
      _
    $region5: #{tpu_custom_call.1} parent=1 // pred_fallthru
      _
    // Predicated region
    $region6: #{tpu_custom_call.1} parent=1 // pred_check
      _
    $region7: #{tpu_custom_call.1} parent=1 // pred_check_branch
      %14 = sbr.rel (0) target = $region9
    $region8: #{tpu_custom_call.1} parent=1 // pred_region
      _
    $region9: #{tpu_custom_call.1} parent=1 // pred_fallthru
      _
    // Predicated region
    $region10: #{tpu_custom_call.1} parent=1 // pred_check
      _
    $region11: #{tpu_custom_call.1} parent=1 // pred_check_branch
      %16 = sbr.rel (0) target = $region13
    $region12: #{tpu_custom_call.1} parent=1 // pred_region
      %s18 = ssub.s32 512, 512
      %19 = vsyncadd [#allocation4], %s18
      %s20 = sshll.u32 [#allocation3], 4
      %s21 = int_to_ptr.vmem [resolvable:$true] %s20
      %26 = dma.hbm_to_vmem [thread:$0]  %s2, 512, %s21, [#allocation4], 256, 256, 16
    $region13: #{tpu_custom_call.1} parent=1 // pred_fallthru
      _
    // Predicated region
    $region14: #{tpu_custom_call.1} parent=1 // pred_check
      _
    $region15: #{tpu_custom_call.1} parent=1 // pred_check_branch
      %28 = sbr.rel (0) target = $region17
    $region16: #{tpu_custom_call.1} parent=1 // pred_region
      %29 = dma.done [#allocation4], 512
    $region17: #{tpu_custom_call.1} parent=1 // pred_fallthru
      _
    %v30 = vld [vmem:[#allocation3] sm:$0xff]
    %v31 = vld [vmem:[#allocation3 + $0x8] sm:$0xff]
    %v32 = vld [vmem:[#allocation3 + $0x10] sm:$0xff]
    %v33 = vld [vmem:[#allocation3 + $0x18] sm:$0xff]
    %v34 = vld [vmem:[%s0] sm:$0x3]
    %v36 = vlaneseq
    %v37 = vshrl.u32 %v36, 7
    %v38 = vsub.s32 0, %v37
    %v39 = vrot.slane %v34, %v38
    %v40 = vlaneseq
    %v41 = vshrl.u32 %v40, 7
    %v42 = vsub.s32 1, %v41
    %v43 = vrot.slane %v34, %v42
    %v46 = vmul.f32 %v30, %v39
    %v47 = vmul.f32 %v31, %v43
    %v48 = vmul.f32 %v32, %v39
    %v49 = vmul.f32 %v33, %v43
    %v50 = vadd.f32 %v46, %v47
    %51 = vadd.xlane.f32.xlu0 %v50
    %v52 = vpop.xlane.xlu0 %51
    %v53 = vadd.f32 %v48, %v49
    %54 = vadd.xlane.f32.xlu0 %v53
    %v55 = vpop.xlane.xlu0 %54
    %s56 = sld [smem:[#allocation2]]
    %v57 = vstv %s56
    %v58 = vadd.f32 %v52, %v57
    %v59 = vadd.f32 %v55, %v57
    %v62 = vlaneseq
    %v63 = vand.u32 %v62, 127
    %v64 = vlaneseq
    %v65 = vshrl.u32 %v64, 7
    %v66 = vsub.s32 %v63, %v65
    %v67 = vrot.slane %v58, %v66
    %v68 = vadd.s32 %v63, 4294967288
    %v69 = vlaneseq
    %v70 = vshrl.u32 %v69, 7
    %v71 = vsub.s32 %v68, %v70
    %v72 = vrot.slane %v59, %v71
    %vm73 = vcmask 130112
    %v74 = vsel %vm73, %v72, %v67
    %vm76 = vcmask 122880
    %77 = vst.msk [vmem:[#allocation6] sm:$0x1] %vm76, %v74
    // Predicated region
    $region18: #{tpu_custom_call.1} parent=1 // pred_check
      _
    $region19: #{tpu_custom_call.1} parent=1 // pred_check_branch
      %79 = sbr.rel (0) target = $region21
    $region20: #{tpu_custom_call.1} parent=1 // pred_region
      %s81 = ssub.s32 16, 16
      %82 = vsyncadd [#allocation5], %s81
      %s84 = sshll.u32 [#allocation6], 4
      %s85 = int_to_ptr.vmem [resolvable:$true] %s84
      %87 = dma.vmem_to_hbm [thread:$0]  %s85, 16, %s3, [#allocation5]
    $region21: #{tpu_custom_call.1} parent=1 // pred_fallthru
      _
    // Predicated region
    $region22: #{tpu_custom_call.1} parent=1 // pred_check
      _
    $region23: #{tpu_custom_call.1} parent=1 // pred_check_branch
      %89 = sbr.rel (0) target = $region25
    $region24: #{tpu_custom_call.1} parent=1 // pred_region
      %90 = dma.done [#allocation5], 16
    $region25: #{tpu_custom_call.1} parent=1 // pred_fallthru
      _
    %91 = vsyncpa [#allocation4], 1
    %92 = vsyncpa [#allocation5], 1

</llo_original>
